<compile_context>
chip_gen: v6e
topology: v6e:2x2x1
jax: 0.10.0
libtpu: 0.0.40
codegen_flags: <defaults>
</compile_context>

<pallas_src>
import jax
import jax.numpy as jnp
import numpy as np
from jax.experimental import pallas as pl
from jax.experimental.pallas import tpu as pltpu


_VMEM_LIMIT_BYTES = 32 * 1024 * 1024   # safe on v5e/v6e (128 MiB phys) and v7x (64 MiB)
_FAST_PATH_BYTES = 2 << 20             # raw input size below which the fused path runs
_ROW_TILE_BUDGET = 4 << 20             # ~roofline knee; fits all generations


# ----------------------------- kernels --------------------------------------


def _make_fused_kernel(count, eps):
    """Whole-slab fused kernel (small inputs): stats + normalize in one pass.

    x_ref:     (B, CH, freq) input slab (resident in VMEM)
    gamma_ref: (1, CH, 1) f32
    beta_ref:  (1, CH, 1) f32
    Uses the numerically safer centered variance since x is VMEM-resident.
    """
    inv_count = 1.0 / count

    def kernel(x_ref, gamma_ref, beta_ref, o_ref):
        x = x_ref[...].astype(jnp.float32)                       # (B, CH, freq)
        s = jnp.sum(jnp.sum(x, axis=2, keepdims=True), axis=0, keepdims=True)
        mean = s * inv_count                                      # (1, CH, 1)
        d = x - mean
        ss = jnp.sum(jnp.sum(d * d, axis=2, keepdims=True), axis=0, keepdims=True)
        var = ss * inv_count                                      # (1, CH, 1)
        inv = gamma_ref[...] * jax.lax.rsqrt(var + eps)           # (1, CH, 1)
        o_ref[...] = (d * inv + beta_ref[...]).astype(o_ref.dtype)

    return kernel


def _make_stats_kernel(B, bt, need_mask):
    """Per-lane partial sums over one (bt, Fw) row tile.

    Each grid step writes its own partial row -> the grid axis is fully
    parallel (megacore-friendly on v7x).  Rows past the true row count B in
    the ragged last tile are masked (their VMEM contents are undefined).
    """

    def kernel(x_ref, sum_ref, sumsq_ref):
        x = x_ref[...].astype(jnp.float32)                        # (bt, Fw)
        if need_mask:
            i = pl.program_id(0)
            rows = jax.lax.broadcasted_iota(jnp.int32, (bt, 1), 0)
            x = jnp.where(i * bt + rows < B, x, 0.0)
        sum_ref[...] = jnp.sum(x, axis=0, keepdims=True)[None]        # (1,1,Fw)
        sumsq_ref[...] = jnp.sum(x * x, axis=0, keepdims=True)[None]  # (1,1,Fw)

    return kernel


def _norm_kernel(x_ref, scsh_ref, out_ref):
    """Per-lane affine: out = x * scale + shift (scale/shift broadcast rows)."""
    x = x_ref[...].astype(jnp.float32)                 # (bt, Fw)
    scale = scsh_ref[0:1, :]                           # (1, Fw)
    shift = scsh_ref[1:2, :]                           # (1, Fw)
    out_ref[...] = (x * scale + shift).astype(out_ref.dtype)


# ----------------------------- wrapper ---------------------------------------


def _choose_row_tile(B, Fw, itemsize, budget_bytes=_ROW_TILE_BUDGET):
    """Dtype-aware row tile: big enough to amortize per-step overhead, sublane
    aligned (8 for 4-byte, 16 for 2-byte, 32 for 1-byte), bounded by budget."""
    sub = max(8, 32 // max(1, itemsize))
    row_bytes = max(1, Fw * itemsize)
    bt = budget_bytes // row_bytes
    bt = max(sub, min(2048, (bt // sub) * sub))
    if B <= bt:
        # Never request a block larger than the array along the row axis.
        bt = B if B < sub else (B // sub) * sub
    return bt


def spectrogram_norm(x, gamma, beta, *, eps=1e-5, force_tiled=False):
    """x: (T, N, num_bands, C, freq); gamma/beta: (num_bands * C,)."""
    T, N, bands, C, freq = (int(d) for d in x.shape)
    CH = bands * C
    assert gamma.shape == (CH,) and beta.shape == (CH,)

    B = T * N
    Fw = CH * freq
    itemsize = jnp.dtype(x.dtype).itemsize

    # ---------------- small-input fast path (single fused kernel) ------------
    if not force_tiled and B * Fw * itemsize <= _FAST_PATH_BYTES:
        x3 = x.reshape(B, CH, freq)                    # free contiguous reshape
        g3 = gamma.astype(jnp.float32).reshape(1, CH, 1)
        b3 = beta.astype(jnp.float32).reshape(1, CH, 1)
        y = pl.pallas_call(
            _make_fused_kernel(float(B * freq), float(eps)),
            out_shape=jax.ShapeDtypeStruct((B, CH, freq), x.dtype),
            compiler_params=pltpu.CompilerParams(
                vmem_limit_bytes=_VMEM_LIMIT_BYTES),
        )(x3, g3, b3)
        return y.reshape(T, N, bands, C, freq)

    # ---------------- streaming tiled path ------------------------------------
    # Free contiguous reshape: (T, N, bands, C, freq) -> (B, CH*freq), lane-dense.
    x2 = x.reshape(B, Fw)
    bt = _choose_row_tile(B, Fw, itemsize)
    nb = pl.cdiv(B, bt)                # no padding: ragged last tile is masked
    need_mask = (B % bt) != 0

    # ---- pass 1: per-lane partial sums (one HBM read of x, fully parallel) --
    sum_parts, sumsq_parts = pl.pallas_call(
        _make_stats_kernel(B, bt, need_mask),
        out_shape=(jax.ShapeDtypeStruct((nb, 1, Fw), jnp.float32),
                   jax.ShapeDtypeStruct((nb, 1, Fw), jnp.float32)),
        grid_spec=pltpu.PrefetchScalarGridSpec(
            num_scalar_prefetch=0,
            grid=(nb,),
            in_specs=[pl.BlockSpec((bt, Fw), lambda i: (i, 0))],
            out_specs=(pl.BlockSpec((1, 1, Fw), lambda i: (i, 0, 0)),
                       pl.BlockSpec((1, 1, Fw), lambda i: (i, 0, 0))),
        ),
        compiler_params=pltpu.CompilerParams(
            dimension_semantics=("parallel",),
            vmem_limit_bytes=_VMEM_LIMIT_BYTES),
    )(x2)

    # ---- tiny finalize (a few KB) in plain JAX -------------------------------
    count = jnp.float32(B * freq)                      # elements per channel
    s_lane = jnp.sum(sum_parts, axis=(0, 1))           # (Fw,)
    ss_lane = jnp.sum(sumsq_parts, axis=(0, 1))        # (Fw,)
    s_ch = jnp.sum(s_lane.reshape(CH, freq), axis=1)   # (CH,)
    ss_ch = jnp.sum(ss_lane.reshape(CH, freq), axis=1)
    mean = s_ch / count
    # TODO(synk): E[x^2]-E[x]^2 in f32 (clamped) can lose precision when
    # |mean| >> std at very large T*N; a centered second stats pass would fix
    # it at the cost of one extra HBM read.
    var = jnp.maximum(ss_ch / count - mean * mean, 0.0)    # biased variance
    inv = gamma.astype(jnp.float32) * jax.lax.rsqrt(var + eps)   # (CH,)
    shift = beta.astype(jnp.float32) - mean * inv                # (CH,)
    scale_lane = jnp.broadcast_to(inv[:, None], (CH, freq)).reshape(Fw)
    shift_lane = jnp.broadcast_to(shift[:, None], (CH, freq)).reshape(Fw)
    scsh = jnp.stack([scale_lane, shift_lane], axis=0)           # (2, Fw) f32

    # ---- pass 2: normalize (one HBM read + one write, lane-dense stores) ----
    y = pl.pallas_call(
        _norm_kernel,
        out_shape=jax.ShapeDtypeStruct((B, Fw), x.dtype),
        grid_spec=pltpu.PrefetchScalarGridSpec(
            num_scalar_prefetch=0,
            grid=(nb,),
            in_specs=[pl.BlockSpec((bt, Fw), lambda i: (i, 0)),
                      pl.BlockSpec((2, Fw), lambda i: (0, 0))],
            out_specs=pl.BlockSpec((bt, Fw), lambda i: (i, 0)),
        ),
        compiler_params=pltpu.CompilerParams(
            dimension_semantics=("parallel",),
            vmem_limit_bytes=_VMEM_LIMIT_BYTES),
    )(x2, scsh)

    return y.reshape(T, N, bands, C, freq)


# ----------------------------- reference -------------------------------------


def reference(x, gamma, beta, eps=1e-5):
    """Pure-JAX mirror of nn.BatchNorm2d training-mode forward per the module."""
    T, N, bands, C, freq = x.shape
    CH = bands * C
    xc = x.reshape(T, N, CH, freq).astype(jnp.float32)
    mean = xc.mean(axis=(0, 1, 3), keepdims=True)
    var = jnp.mean((xc - mean) ** 2, axis=(0, 1, 3), keepdims=True)
    y = (xc - mean) / jnp.sqrt(var + eps)
    y = y * gamma.reshape(1, 1, CH, 1) + beta.reshape(1, 1, CH, 1)
    return y.reshape(T, N, bands, C, freq).astype(x.dtype)


# ----------------------------- test ------------------------------------------


if __name__ == "__main__":
    # Small shapes consistent with the module: 2 bands x 16 electrode channels.
    bands, C, freq = 2, 16, 8
    CH = bands * C

    key = jax.random.PRNGKey(0)
    kx, kg, kb, kx2 = jax.random.split(key, 4)
    gamma = 1.0 + 0.1 * jax.random.normal(kg, (CH,), dtype=jnp.float32)
    beta = 0.1 * jax.random.normal(kb, (CH,), dtype=jnp.float32)

    # 1) Fast path: whole slab resident in VMEM (single fused kernel).
    T, N = 8, 2
    x = 0.5 * jax.random.normal(kx, (T, N, bands, C, freq), dtype=jnp.float32) + 0.3
    out = jax.block_until_ready(spectrogram_norm(x, gamma, beta))
    assert out.shape == (T, N, bands, C, freq), out.shape
    np.testing.assert_allclose(np.asarray(out), np.asarray(reference(x, gamma, beta)),
                               rtol=1e-4, atol=1e-4)

    # 2) Streaming tiled path with a ragged last row tile (exercises in-kernel
    #    masking and the padding-free partial-block stores).
    T2, N2 = 9, 3   # B = 27 -> row tile 24 + ragged tile of 3 rows
    x2 = 0.5 * jax.random.normal(kx2, (T2, N2, bands, C, freq), dtype=jnp.float32) - 0.2
    out2 = jax.block_until_ready(spectrogram_norm(x2, gamma, beta, force_tiled=True))
    assert out2.shape == (T2, N2, bands, C, freq), out2.shape
    np.testing.assert_allclose(np.asarray(out2), np.asarray(reference(x2, gamma, beta)),
                               rtol=1e-4, atol=1e-4)

    print("KERNEL_OK")
</pallas_src>

<mosaic_0001>
module attributes {stable_mosaic.version = 11 : i64} {
  func.func @kernel(%arg0: memref<16x32x8xf32, #tpu.memory_space<vmem>>, %arg1: memref<1x32x1xf32, #tpu.memory_space<vmem>>, %arg2: memref<1x32x1xf32, #tpu.memory_space<vmem>>, %arg3: memref<16x32x8xf32, #tpu.memory_space<vmem>>) attributes {dimension_semantics = [], scalar_prefetch = 0 : i64, scratch_operands = 0 : i64, tpu.core_type = #tpu.core_type<tc>} {
    %c0 = arith.constant 0 : index
    %c0_0 = arith.constant 0 : index
    %c0_1 = arith.constant 0 : index
    %0 = vector.load %arg0[%c0, %c0_0, %c0_1] : memref<16x32x8xf32, #tpu.memory_space<vmem>>, vector<16x32x8xf32>
    %cst = arith.constant dense<0.000000e+00> : vector<16x32xf32>
    %1 = vector.multi_reduction <add>, %0, %cst [2] : vector<16x32x8xf32> to vector<16x32xf32>
    %2 = vector.shape_cast %1 : vector<16x32xf32> to vector<16x32x1xf32>
    %cst_2 = arith.constant dense<0.000000e+00> : vector<32x1xf32>
    %3 = vector.multi_reduction <add>, %2, %cst_2 [0] : vector<16x32x1xf32> to vector<32x1xf32>
    %4 = vector.shape_cast %3 : vector<32x1xf32> to vector<1x32x1xf32>
    %cst_3 = arith.constant 7.812500e-03 : f32
    %5 = vector.broadcast %cst_3 : f32 to vector<1x32x1xf32>
    %6 = arith.mulf %4, %5 : vector<1x32x1xf32>
    %7 = vector.broadcast %6 : vector<1x32x1xf32> to vector<16x32x8xf32>
    %8 = arith.subf %0, %7 : vector<16x32x8xf32>
    %9 = arith.mulf %8, %8 : vector<16x32x8xf32>
    %cst_4 = arith.constant dense<0.000000e+00> : vector<16x32xf32>
    %10 = vector.multi_reduction <add>, %9, %cst_4 [2] : vector<16x32x8xf32> to vector<16x32xf32>
    %11 = vector.shape_cast %10 : vector<16x32xf32> to vector<16x32x1xf32>
    %cst_5 = arith.constant dense<0.000000e+00> : vector<32x1xf32>
    %12 = vector.multi_reduction <add>, %11, %cst_5 [0] : vector<16x32x1xf32> to vector<32x1xf32>
    %13 = vector.shape_cast %12 : vector<32x1xf32> to vector<1x32x1xf32>
    %cst_6 = arith.constant 7.812500e-03 : f32
    %14 = vector.broadcast %cst_6 : f32 to vector<1x32x1xf32>
    %15 = arith.mulf %13, %14 : vector<1x32x1xf32>
    %c0_7 = arith.constant 0 : index
    %c0_8 = arith.constant 0 : index
    %c0_9 = arith.constant 0 : index
    %16 = vector.load %arg1[%c0_7, %c0_8, %c0_9] : memref<1x32x1xf32, #tpu.memory_space<vmem>>, vector<1x32x1xf32>
    %cst_10 = arith.constant 9.99999974E-6 : f32
    %17 = vector.broadcast %cst_10 : f32 to vector<1x32x1xf32>
    %18 = arith.addf %15, %17 : vector<1x32x1xf32>
    %19 = math.rsqrt %18 : vector<1x32x1xf32>
    %20 = arith.mulf %16, %19 : vector<1x32x1xf32>
    %21 = vector.broadcast %20 : vector<1x32x1xf32> to vector<16x32x8xf32>
    %22 = arith.mulf %8, %21 : vector<16x32x8xf32>
    %c0_11 = arith.constant 0 : index
    %c0_12 = arith.constant 0 : index
    %c0_13 = arith.constant 0 : index
    %23 = vector.load %arg2[%c0_11, %c0_12, %c0_13] : memref<1x32x1xf32, #tpu.memory_space<vmem>>, vector<1x32x1xf32>
    %24 = vector.broadcast %23 : vector<1x32x1xf32> to vector<16x32x8xf32>
    %25 = arith.addf %22, %24 : vector<16x32x8xf32>
    %c0_14 = arith.constant 0 : index
    %c0_15 = arith.constant 0 : index
    %c0_16 = arith.constant 0 : index
    %26 = vector.load %arg3[%c0_14, %c0_15, %c0_16] : memref<16x32x8xf32, #tpu.memory_space<vmem>>, vector<16x32x8xf32>
    tpu.vector_store %arg3[%c0_14, %c0_15, %c0_16], %25 {strides = array<i32>} : memref<16x32x8xf32, #tpu.memory_space<vmem>>, vector<16x32x8xf32>,
    return
  }
}

</mosaic_0001>

<llo_original>
// kernel: tpu_custom_call.1
$region0: #{tpu_custom_call.1}
  #allocation0 [shape = 'u32[]', space=smem, size = 0x4, offset = 0x4, fixed_abs, tag = 'smem constant byte address 0x4 - core index']
  #allocation1 [shape = 'u32[144,128]{1,0:T(1,128)}', space=vmem, size = 0x12000, scoped, tag = 'internal scratch']
  %s0 = inlined_call_operand.vmem [shape: f32[16,32,8], index: 0, kind: input, shape index: {}]
  %s1 = inlined_call_operand.vmem [shape: f32[1,32,1], index: 1, kind: input, shape index: {}]
  %s2 = inlined_call_operand.vmem [shape: f32[1,32,1], index: 2, kind: input, shape index: {}]
  %s3 = inlined_call_operand.vmem [shape: f32[16,32,8], index: 3, kind: output, shape index: {}]
  %s4 = sld [smem:[#allocation0]]
  $region22: #{tpu_custom_call.1} parent=0
    _
  %s6 = ssub.s32 1, %s4
  %s7 = scalar_select 0, %s6, %s4
  // Predicated region
  $region2: #{tpu_custom_call.1} parent=0 // pred_check
    _
  $region3: #{tpu_custom_call.1} parent=0 // pred_check_branch
    %9 = sbr.rel (0) target = $region5
  $region4: #{tpu_custom_call.1} parent=0 // pred_region
    _
  $region5: #{tpu_custom_call.1} parent=0 // pred_fallthru
    _
  // Predicated region
  $region6: #{tpu_custom_call.1} parent=0 // pred_check
    _
  $region7: #{tpu_custom_call.1} parent=0 // pred_check_branch
    %11 = sbr.rel (0) target = $region9
  $region8: #{tpu_custom_call.1} parent=0 // pred_region
    _
  $region9: #{tpu_custom_call.1} parent=0 // pred_fallthru
    _
  // Predicated region
  $region10: #{tpu_custom_call.1} parent=0 // pred_check
    _
  $region11: #{tpu_custom_call.1} parent=0 // pred_check_branch
    %13 = sbr.rel (0) target = $region13
  $region12: #{tpu_custom_call.1} parent=0 // pred_region
    _
  $region13: #{tpu_custom_call.1} parent=0 // pred_fallthru
    _
  %v14 = vld [vmem:[%s0] sm:$0xff]
  %v15 = vld [vmem:[%s0 + $0x8] sm:$0xff]
  %v16 = vld [vmem:[%s0 + $0x10] sm:$0xff]
  %v17 = vld [vmem:[%s0 + $0x18] sm:$0xff]
  %v18 = vld [vmem:[%s0 + $0x20] sm:$0xff]
  %v19 = vld [vmem:[%s0 + $0x28] sm:$0xff]
  %v20 = vld [vmem:[%s0 + $0x30] sm:$0xff]
  %v21 = vld [vmem:[%s0 + $0x38] sm:$0xff]
  %v22 = vld [vmem:[%s0 + $0x40] sm:$0xff]
  %v23 = vld [vmem:[%s0 + $0x48] sm:$0xff]
  %v24 = vld [vmem:[%s0 + $0x50] sm:$0xff]
  %v25 = vld [vmem:[%s0 + $0x58] sm:$0xff]
  %v26 = vld [vmem:[%s0 + $0x60] sm:$0xff]
  %v27 = vld [vmem:[%s0 + $0x68] sm:$0xff]
  %v28 = vld [vmem:[%s0 + $0x70] sm:$0xff]
  %v29 = vld [vmem:[%s0 + $0x78] sm:$0xff]
  %v30 = vld [vmem:[%s0 + $0x80] sm:$0xff]
  %v31 = vld [vmem:[%s0 + $0x88] sm:$0xff]
  %v32 = vld [vmem:[%s0 + $0x90] sm:$0xff]
  %v33 = vld [vmem:[%s0 + $0x98] sm:$0xff]
  %v34 = vld [vmem:[%s0 + $0xa0] sm:$0xff]
  %v35 = vld [vmem:[%s0 + $0xa8] sm:$0xff]
  %v36 = vld [vmem:[%s0 + $0xb0] sm:$0xff]
  %v37 = vld [vmem:[%s0 + $0xb8] sm:$0xff]
  %v38 = vld [vmem:[%s0 + $0xc0] sm:$0xff]
  %v39 = vld [vmem:[%s0 + $0xc8] sm:$0xff]
  %v40 = vld [vmem:[%s0 + $0xd0] sm:$0xff]
  %v41 = vld [vmem:[%s0 + $0xd8] sm:$0xff]
  %v42 = vld [vmem:[%s0 + $0xe0] sm:$0xff]
  %v43 = vld [vmem:[%s0 + $0xe8] sm:$0xff]
  %v44 = vld [vmem:[%s0 + $0xf0] sm:$0xff]
  %v45 = vld [vmem:[%s0 + $0xf8] sm:$0xff]
  %v46 = vld [vmem:[%s0 + $0x100] sm:$0xff]
  %v47 = vld [vmem:[%s0 + $0x108] sm:$0xff]
  %v48 = vld [vmem:[%s0 + $0x110] sm:$0xff]
  %v49 = vld [vmem:[%s0 + $0x118] sm:$0xff]
  %v50 = vld [vmem:[%s0 + $0x120] sm:$0xff]
  %v51 = vld [vmem:[%s0 + $0x128] sm:$0xff]
  %v52 = vld [vmem:[%s0 + $0x130] sm:$0xff]
  %v53 = vld [vmem:[%s0 + $0x138] sm:$0xff]
  %v54 = vld [vmem:[%s0 + $0x140] sm:$0xff]
  %v55 = vld [vmem:[%s0 + $0x148] sm:$0xff]
  %v56 = vld [vmem:[%s0 + $0x150] sm:$0xff]
  %v57 = vld [vmem:[%s0 + $0x158] sm:$0xff]
  %v58 = vld [vmem:[%s0 + $0x160] sm:$0xff]
  %v59 = vld [vmem:[%s0 + $0x168] sm:$0xff]
  %v60 = vld [vmem:[%s0 + $0x170] sm:$0xff]
  %v61 = vld [vmem:[%s0 + $0x178] sm:$0xff]
  %v62 = vld [vmem:[%s0 + $0x180] sm:$0xff]
  %v63 = vld [vmem:[%s0 + $0x188] sm:$0xff]
  %v64 = vld [vmem:[%s0 + $0x190] sm:$0xff]
  %v65 = vld [vmem:[%s0 + $0x198] sm:$0xff]
  %v66 = vld [vmem:[%s0 + $0x1a0] sm:$0xff]
  %v67 = vld [vmem:[%s0 + $0x1a8] sm:$0xff]
  %v68 = vld [vmem:[%s0 + $0x1b0] sm:$0xff]
  %v69 = vld [vmem:[%s0 + $0x1b8] sm:$0xff]
  %v70 = vld [vmem:[%s0 + $0x1c0] sm:$0xff]
  %v71 = vld [vmem:[%s0 + $0x1c8] sm:$0xff]
  %v72 = vld [vmem:[%s0 + $0x1d0] sm:$0xff]
  %v73 = vld [vmem:[%s0 + $0x1d8] sm:$0xff]
  %v74 = vld [vmem:[%s0 + $0x1e0] sm:$0xff]
  %v75 = vld [vmem:[%s0 + $0x1e8] sm:$0xff]
  %v76 = vld [vmem:[%s0 + $0x1f0] sm:$0xff]
  %v77 = vld [vmem:[%s0 + $0x1f8] sm:$0xff]
  %vm78 = vcmask 64512
  %v79 = vsel %vm78, %v14, 0.0
  %80 = vadd.xlane.f32.xlu0 %v79
  %v81 = vpop.xlane.xlu0 %80
  %v82 = vsel %vm78, %v15, 0.0
  %83 = vadd.xlane.f32.xlu0 %v82
  %v84 = vpop.xlane.xlu0 %83
  %v85 = vsel %vm78, %v16, 0.0
  %86 = vadd.xlane.f32.xlu0 %v85
  %v87 = vpop.xlane.xlu0 %86
  %v88 = vsel %vm78, %v17, 0.0
  %89 = vadd.xlane.f32.xlu0 %v88
  %v90 = vpop.xlane.xlu0 %89
  %v91 = vsel %vm78, %v18, 0.0
  %92 = vadd.xlane.f32.xlu0 %v91
  %v93 = vpop.xlane.xlu0 %92
  %v94 = vsel %vm78, %v19, 0.0
  %95 = vadd.xlane.f32.xlu0 %v94
  %v96 = vpop.xlane.xlu0 %95
  %v97 = vsel %vm78, %v20, 0.0
  %98 = vadd.xlane.f32.xlu0 %v97
  %v99 = vpop.xlane.xlu0 %98
  %v100 = vsel %vm78, %v21, 0.0
  %101 = vadd.xlane.f32.xlu0 %v100
  %v102 = vpop.xlane.xlu0 %101
  %v103 = vsel %vm78, %v22, 0.0
  %104 = vadd.xlane.f32.xlu0 %v103
  %v105 = vpop.xlane.xlu0 %104
  %v106 = vsel %vm78, %v23, 0.0
  %107 = vadd.xlane.f32.xlu0 %v106
  %v108 = vpop.xlane.xlu0 %107
  %v109 = vsel %vm78, %v24, 0.0
  %110 = vadd.xlane.f32.xlu0 %v109
  %v111 = vpop.xlane.xlu0 %110
  %v112 = vsel %vm78, %v25, 0.0
  %113 = vadd.xlane.f32.xlu0 %v112
  %v114 = vpop.xlane.xlu0 %113
  %v115 = vsel %vm78, %v26, 0.0
  %116 = vadd.xlane.f32.xlu0 %v115
  %v117 = vpop.xlane.xlu0 %116
  %v118 = vsel %vm78, %v27, 0.0
  %119 = vadd.xlane.f32.xlu0 %v118
  %v120 = vpop.xlane.xlu0 %119
  %v121 = vsel %vm78, %v28, 0.0
  %122 = vadd.xlane.f32.xlu0 %v121
  %v123 = vpop.xlane.xlu0 %122
  %v124 = vsel %vm78, %v29, 0.0
  %125 = vadd.xlane.f32.xlu0 %v124
  %v126 = vpop.xlane.xlu0 %125
  %v127 = vsel %vm78, %v30, 0.0
  %128 = vadd.xlane.f32.xlu0 %v127
  %v129 = vpop.xlane.xlu0 %128
  %v130 = vsel %vm78, %v31, 0.0
  %131 = vadd.xlane.f32.xlu0 %v130
  %v132 = vpop.xlane.xlu0 %131
  %v133 = vsel %vm78, %v32, 0.0
  %134 = vadd.xlane.f32.xlu0 %v133
  %v135 = vpop.xlane.xlu0 %134
  %v136 = vsel %vm78, %v33, 0.0
  %137 = vadd.xlane.f32.xlu0 %v136
  %v138 = vpop.xlane.xlu0 %137
  %v139 = vsel %vm78, %v34, 0.0
  %140 = vadd.xlane.f32.xlu0 %v139
  %v141 = vpop.xlane.xlu0 %140
  %v142 = vsel %vm78, %v35, 0.0
  %143 = vadd.xlane.f32.xlu0 %v142
  %v144 = vpop.xlane.xlu0 %143
  %v145 = vsel %vm78, %v36, 0.0
  %146 = vadd.xlane.f32.xlu0 %v145
  %v147 = vpop.xlane.xlu0 %146
  %v148 = vsel %vm78, %v37, 0.0
  %149 = vadd.xlane.f32.xlu0 %v148
  %v150 = vpop.xlane.xlu0 %149
  %v151 = vsel %vm78, %v38, 0.0
  %152 = vadd.xlane.f32.xlu0 %v151
  %v153 = vpop.xlane.xlu0 %152
  %v154 = vsel %vm78, %v39, 0.0
  %155 = vadd.xlane.f32.xlu0 %v154
  %v156 = vpop.xlane.xlu0 %155
  %v157 = vsel %vm78, %v40, 0.0
  %158 = vadd.xlane.f32.xlu0 %v157
  %v159 = vpop.xlane.xlu0 %158
  %v160 = vsel %vm78, %v41, 0.0
  %161 = vadd.xlane.f32.xlu0 %v160
  %v162 = vpop.xlane.xlu0 %161
  %v163 = vsel %vm78, %v42, 0.0
  %164 = vadd.xlane.f32.xlu0 %v163
  %v165 = vpop.xlane.xlu0 %164
  %v166 = vsel %vm78, %v43, 0.0
  %167 = vadd.xlane.f32.xlu0 %v166
  %v168 = vpop.xlane.xlu0 %167
  %v169 = vsel %vm78, %v44, 0.0
  %170 = vadd.xlane.f32.xlu0 %v169
  %v171 = vpop.xlane.xlu0 %170
  %v172 = vsel %vm78, %v45, 0.0
  %173 = vadd.xlane.f32.xlu0 %v172
  %v174 = vpop.xlane.xlu0 %173
  %v175 = vsel %vm78, %v46, 0.0
  %176 = vadd.xlane.f32.xlu0 %v175
  %v177 = vpop.xlane.xlu0 %176
  %v178 = vsel %vm78, %v47, 0.0
  %179 = vadd.xlane.f32.xlu0 %v178
  %v180 = vpop.xlane.xlu0 %179
  %v181 = vsel %vm78, %v48, 0.0
  %182 = vadd.xlane.f32.xlu0 %v181
  %v183 = vpop.xlane.xlu0 %182
  %v184 = vsel %vm78, %v49, 0.0
  %185 = vadd.xlane.f32.xlu0 %v184
  %v186 = vpop.xlane.xlu0 %185
  %v187 = vsel %vm78, %v50, 0.0
  %188 = vadd.xlane.f32.xlu0 %v187
  %v189 = vpop.xlane.xlu0 %188
  %v190 = vsel %vm78, %v51, 0.0
  %191 = vadd.xlane.f32.xlu0 %v190
  %v192 = vpop.xlane.xlu0 %191
  %v193 = vsel %vm78, %v52, 0.0
  %194 = vadd.xlane.f32.xlu0 %v193
  %v195 = vpop.xlane.xlu0 %194
  %v196 = vsel %vm78, %v53, 0.0
  %197 = vadd.xlane.f32.xlu0 %v196
  %v198 = vpop.xlane.xlu0 %197
  %v199 = vsel %vm78, %v54, 0.0
  %200 = vadd.xlane.f32.xlu0 %v199
  %v201 = vpop.xlane.xlu0 %200
  %v202 = vsel %vm78, %v55, 0.0
  %203 = vadd.xlane.f32.xlu0 %v202
  %v204 = vpop.xlane.xlu0 %203
  %v205 = vsel %vm78, %v56, 0.0
  %206 = vadd.xlane.f32.xlu0 %v205
  %v207 = vpop.xlane.xlu0 %206
  %v208 = vsel %vm78, %v57, 0.0
  %209 = vadd.xlane.f32.xlu0 %v208
  %v210 = vpop.xlane.xlu0 %209
  %v211 = vsel %vm78, %v58, 0.0
  %212 = vadd.xlane.f32.xlu0 %v211
  %v213 = vpop.xlane.xlu0 %212
  %v214 = vsel %vm78, %v59, 0.0
  %215 = vadd.xlane.f32.xlu0 %v214
  %v216 = vpop.xlane.xlu0 %215
  %v217 = vsel %vm78, %v60, 0.0
  %218 = vadd.xlane.f32.xlu0 %v217
  %v219 = vpop.xlane.xlu0 %218
  %v220 = vsel %vm78, %v61, 0.0
  %221 = vadd.xlane.f32.xlu0 %v220
  %v222 = vpop.xlane.xlu0 %221
  %v223 = vsel %vm78, %v62, 0.0
  %224 = vadd.xlane.f32.xlu0 %v223
  %v225 = vpop.xlane.xlu0 %224
  %v226 = vsel %vm78, %v63, 0.0
  %227 = vadd.xlane.f32.xlu0 %v226
  %v228 = vpop.xlane.xlu0 %227
  %v229 = vsel %vm78, %v64, 0.0
  %230 = vadd.xlane.f32.xlu0 %v229
  %v231 = vpop.xlane.xlu0 %230
  %v232 = vsel %vm78, %v65, 0.0
  %233 = vadd.xlane.f32.xlu0 %v232
  %v234 = vpop.xlane.xlu0 %233
  %v235 = vsel %vm78, %v66, 0.0
  %236 = vadd.xlane.f32.xlu0 %v235
  %v237 = vpop.xlane.xlu0 %236
  %v238 = vsel %vm78, %v67, 0.0
  %239 = vadd.xlane.f32.xlu0 %v238
  %v240 = vpop.xlane.xlu0 %239
  %v241 = vsel %vm78, %v68, 0.0
  %242 = vadd.xlane.f32.xlu0 %v241
  %v243 = vpop.xlane.xlu0 %242
  %v244 = vsel %vm78, %v69, 0.0
  %245 = vadd.xlane.f32.xlu0 %v244
  %v246 = vpop.xlane.xlu0 %245
  %v247 = vsel %vm78, %v70, 0.0
  %248 = vadd.xlane.f32.xlu0 %v247
  %v249 = vpop.xlane.xlu0 %248
  %v250 = vsel %vm78, %v71, 0.0
  %251 = vadd.xlane.f32.xlu0 %v250
  %v252 = vpop.xlane.xlu0 %251
  %v253 = vsel %vm78, %v72, 0.0
  %254 = vadd.xlane.f32.xlu0 %v253
  %v255 = vpop.xlane.xlu0 %254
  %v256 = vsel %vm78, %v73, 0.0
  %257 = vadd.xlane.f32.xlu0 %v256
  %v258 = vpop.xlane.xlu0 %257
  %v259 = vsel %vm78, %v74, 0.0
  %260 = vadd.xlane.f32.xlu0 %v259
  %v261 = vpop.xlane.xlu0 %260
  %v262 = vsel %vm78, %v75, 0.0
  %263 = vadd.xlane.f32.xlu0 %v262
  %v264 = vpop.xlane.xlu0 %263
  %v265 = vsel %vm78, %v76, 0.0
  %266 = vadd.xlane.f32.xlu0 %v265
  %v267 = vpop.xlane.xlu0 %266
  %v268 = vsel %vm78, %v77, 0.0
  %269 = vadd.xlane.f32.xlu0 %v268
  %v270 = vpop.xlane.xlu0 %269
  %v271 = vadd.f32 %v81, %v93
  %v272 = vadd.f32 %v271, %v105
  %v273 = vadd.f32 %v272, %v117
  %v274 = vadd.f32 %v273, %v129
  %v275 = vadd.f32 %v274, %v141
  %v276 = vadd.f32 %v275, %v153
  %v277 = vadd.f32 %v276, %v165
  %v278 = vadd.f32 %v277, %v177
  %v279 = vadd.f32 %v278, %v189
  %v280 = vadd.f32 %v279, %v201
  %v281 = vadd.f32 %v280, %v213
  %v282 = vadd.f32 %v281, %v225
  %v283 = vadd.f32 %v282, %v237
  %v284 = vadd.f32 %v283, %v249
  %v285 = vadd.f32 %v284, %v261
  %v286 = vadd.f32 %v84, %v96
  %v287 = vadd.f32 %v286, %v108
  %v288 = vadd.f32 %v287, %v120
  %v289 = vadd.f32 %v288, %v132
  %v290 = vadd.f32 %v289, %v144
  %v291 = vadd.f32 %v290, %v156
  %v292 = vadd.f32 %v291, %v168
  %v293 = vadd.f32 %v292, %v180
  %v294 = vadd.f32 %v293, %v192
  %v295 = vadd.f32 %v294, %v204
  %v296 = vadd.f32 %v295, %v216
  %v297 = vadd.f32 %v296, %v228
  %v298 = vadd.f32 %v297, %v240
  %v299 = vadd.f32 %v298, %v252
  %v300 = vadd.f32 %v299, %v264
  %v301 = vadd.f32 %v87, %v99
  %v302 = vadd.f32 %v301, %v111
  %v303 = vadd.f32 %v302, %v123
  %v304 = vadd.f32 %v303, %v135
  %v305 = vadd.f32 %v304, %v147
  %v306 = vadd.f32 %v305, %v159
  %v307 = vadd.f32 %v306, %v171
  %v308 = vadd.f32 %v307, %v183
  %v309 = vadd.f32 %v308, %v195
  %v310 = vadd.f32 %v309, %v207
  %v311 = vadd.f32 %v310, %v219
  %v312 = vadd.f32 %v311, %v231
  %v313 = vadd.f32 %v312, %v243
  %v314 = vadd.f32 %v313, %v255
  %v315 = vadd.f32 %v314, %v267
  %v316 = vadd.f32 %v90, %v102
  %v317 = vadd.f32 %v316, %v114
  %v318 = vadd.f32 %v317, %v126
  %v319 = vadd.f32 %v318, %v138
  %v320 = vadd.f32 %v319, %v150
  %v321 = vadd.f32 %v320, %v162
  %v322 = vadd.f32 %v321, %v174
  %v323 = vadd.f32 %v322, %v186
  %v324 = vadd.f32 %v323, %v198
  %v325 = vadd.f32 %v324, %v210
  %v326 = vadd.f32 %v325, %v222
  %v327 = vadd.f32 %v326, %v234
  %v328 = vadd.f32 %v327, %v246
  %v329 = vadd.f32 %v328, %v258
  %v330 = vadd.f32 %v329, %v270
  %v331 = vmul.f32 %v285, 0.0078125
  %v332 = vmul.f32 %v300, 0.0078125
  %v333 = vmul.f32 %v315, 0.0078125
  %v334 = vmul.f32 %v330, 0.0078125
  %v335 = vsub.f32 %v14, %v331
  %v336 = vsub.f32 %v15, %v332
  %v337 = vsub.f32 %v16, %v333
  %v338 = vsub.f32 %v17, %v334
  %v339 = vsub.f32 %v18, %v331
  %v340 = vsub.f32 %v19, %v332
  %v341 = vsub.f32 %v20, %v333
  %v342 = vsub.f32 %v21, %v334
  %v343 = vsub.f32 %v22, %v331
  %v344 = vsub.f32 %v23, %v332
  %v345 = vsub.f32 %v24, %v333
  %v346 = vsub.f32 %v25, %v334
  %v347 = vsub.f32 %v26, %v331
  %v348 = vsub.f32 %v27, %v332
  %v349 = vsub.f32 %v28, %v333
  %v350 = vsub.f32 %v29, %v334
  %v351 = vsub.f32 %v30, %v331
  %v352 = vsub.f32 %v31, %v332
  %v353 = vsub.f32 %v32, %v333
  %v354 = vsub.f32 %v33, %v334
  %v355 = vsub.f32 %v34, %v331
  %v356 = vsub.f32 %v35, %v332
  %v357 = vsub.f32 %v36, %v333
  %v358 = vsub.f32 %v37, %v334
  %v359 = vsub.f32 %v38, %v331
  %v360 = vsub.f32 %v39, %v332
  %v361 = vsub.f32 %v40, %v333
  %v362 = vsub.f32 %v41, %v334
  %v363 = vsub.f32 %v42, %v331
  %v364 = vsub.f32 %v43, %v332
  %v365 = vsub.f32 %v44, %v333
  %v366 = vsub.f32 %v45, %v334
  %v367 = vsub.f32 %v46, %v331
  %v368 = vsub.f32 %v47, %v332
  %v369 = vsub.f32 %v48, %v333
  %v370 = vsub.f32 %v49, %v334
  %v371 = vsub.f32 %v50, %v331
  %v372 = vsub.f32 %v51, %v332
  %v373 = vsub.f32 %v52, %v333
  %v374 = vsub.f32 %v53, %v334
  %v375 = vsub.f32 %v54, %v331
  %v376 = vsub.f32 %v55, %v332
  %v377 = vsub.f32 %v56, %v333
  %v378 = vsub.f32 %v57, %v334
  %v379 = vsub.f32 %v58, %v331
  %v380 = vsub.f32 %v59, %v332
  %v381 = vsub.f32 %v60, %v333
  %v382 = vsub.f32 %v61, %v334
  %v383 = vsub.f32 %v62, %v331
  %v384 = vsub.f32 %v63, %v332
  %v385 = vsub.f32 %v64, %v333
  %v386 = vsub.f32 %v65, %v334
  %v387 = vsub.f32 %v66, %v331
  %v388 = vsub.f32 %v67, %v332
  %v389 = vsub.f32 %v68, %v333
  %v390 = vsub.f32 %v69, %v334
  %v391 = vsub.f32 %v70, %v331
  %v392 = vsub.f32 %v71, %v332
  %v393 = vsub.f32 %v72, %v333
  %v394 = vsub.f32 %v73, %v334
  %v395 = vsub.f32 %v74, %v331
  %v396 = vsub.f32 %v75, %v332
  %v397 = vsub.f32 %v76, %v333
  %v398 = vsub.f32 %v77, %v334
  %v399 = vmul.f32 %v335, %v335
  %v400 = vmul.f32 %v336, %v336
  %v401 = vmul.f32 %v337, %v337
  %v402 = vmul.f32 %v338, %v338
  %v403 = vmul.f32 %v339, %v339
  %v404 = vmul.f32 %v340, %v340
  %v405 = vmul.f32 %v341, %v341
  %v406 = vmul.f32 %v342, %v342
  %v407 = vmul.f32 %v343, %v343
  %v408 = vmul.f32 %v344, %v344
  %v409 = vmul.f32 %v345, %v345
  %v410 = vmul.f32 %v346, %v346
  %v411 = vmul.f32 %v347, %v347
  %v412 = vmul.f32 %v348, %v348
  %v413 = vmul.f32 %v349, %v349
  %v414 = vmul.f32 %v350, %v350
  %v415 = vmul.f32 %v351, %v351
  %v416 = vmul.f32 %v352, %v352
  %v417 = vmul.f32 %v353, %v353
  %v418 = vmul.f32 %v354, %v354
  %v419 = vmul.f32 %v355, %v355
  %v420 = vmul.f32 %v356, %v356
  %v421 = vmul.f32 %v357, %v357
  %v422 = vmul.f32 %v358, %v358
  %v423 = vmul.f32 %v359, %v359
  %v424 = vmul.f32 %v360, %v360
  %v425 = vmul.f32 %v361, %v361
  %v426 = vmul.f32 %v362, %v362
  %v427 = vmul.f32 %v363, %v363
  %v428 = vmul.f32 %v364, %v364
  %v429 = vmul.f32 %v365, %v365
  %v430 = vmul.f32 %v366, %v366
  %v431 = vmul.f32 %v367, %v367
  %v432 = vmul.f32 %v368, %v368
  %v433 = vmul.f32 %v369, %v369
  %v434 = vmul.f32 %v370, %v370
  %v435 = vmul.f32 %v371, %v371
  %v436 = vmul.f32 %v372, %v372
  %v437 = vmul.f32 %v373, %v373
  %v438 = vmul.f32 %v374, %v374
  %v439 = vmul.f32 %v375, %v375
  %v440 = vmul.f32 %v376, %v376
  %v441 = vmul.f32 %v377, %v377
  %v442 = vmul.f32 %v378, %v378
  %v443 = vmul.f32 %v379, %v379
  %v444 = vmul.f32 %v380, %v380
  %v445 = vmul.f32 %v381, %v381
  %v446 = vmul.f32 %v382, %v382
  %v447 = vmul.f32 %v383, %v383
  %v448 = vmul.f32 %v384, %v384
  %v449 = vmul.f32 %v385, %v385
  %v450 = vmul.f32 %v386, %v386
  %v451 = vmul.f32 %v387, %v387
  %v452 = vmul.f32 %v388, %v388
  %v453 = vmul.f32 %v389, %v389
  %v454 = vmul.f32 %v390, %v390
  %v455 = vmul.f32 %v391, %v391
  %v456 = vmul.f32 %v392, %v392
  %v457 = vmul.f32 %v393, %v393
  %v458 = vmul.f32 %v394, %v394
  %v459 = vmul.f32 %v395, %v395
  %v460 = vmul.f32 %v396, %v396
  %v461 = vmul.f32 %v397, %v397
  %v462 = vmul.f32 %v398, %v398
  %v463 = vsel %vm78, %v399, 0.0
  %464 = vadd.xlane.f32.xlu0 %v463
  %v465 = vpop.xlane.xlu0 %464
  %v466 = vsel %vm78, %v400, 0.0
  %467 = vadd.xlane.f32.xlu0 %v466
  %v468 = vpop.xlane.xlu0 %467
  %v469 = vsel %vm78, %v401, 0.0
  %470 = vadd.xlane.f32.xlu0 %v469
  %v471 = vpop.xlane.xlu0 %470
  %v472 = vsel %vm78, %v402, 0.0
  %473 = vadd.xlane.f32.xlu0 %v472
  %v474 = vpop.xlane.xlu0 %473
  %v475 = vsel %vm78, %v403, 0.0
  %476 = vadd.xlane.f32.xlu0 %v475
  %v477 = vpop.xlane.xlu0 %476
  %v478 = vsel %vm78, %v404, 0.0
  %479 = vadd.xlane.f32.xlu0 %v478
  %v480 = vpop.xlane.xlu0 %479
  %v481 = vsel %vm78, %v405, 0.0
  %482 = vadd.xlane.f32.xlu0 %v481
  %v483 = vpop.xlane.xlu0 %482
  %v484 = vsel %vm78, %v406, 0.0
  %485 = vadd.xlane.f32.xlu0 %v484
  %v486 = vpop.xlane.xlu0 %485
  %v487 = vsel %vm78, %v407, 0.0
  %488 = vadd.xlane.f32.xlu0 %v487
  %v489 = vpop.xlane.xlu0 %488
  %v490 = vsel %vm78, %v408, 0.0
  %491 = vadd.xlane.f32.xlu0 %v490
  %v492 = vpop.xlane.xlu0 %491
  %v493 = vsel %vm78, %v409, 0.0
  %494 = vadd.xlane.f32.xlu0 %v493
  %v495 = vpop.xlane.xlu0 %494
  %v496 = vsel %vm78, %v410, 0.0
  %497 = vadd.xlane.f32.xlu0 %v496
  %v498 = vpop.xlane.xlu0 %497
  %v499 = vsel %vm78, %v411, 0.0
  %500 = vadd.xlane.f32.xlu0 %v499
  %v501 = vpop.xlane.xlu0 %500
  %v502 = vsel %vm78, %v412, 0.0
  %503 = vadd.xlane.f32.xlu0 %v502
  %v504 = vpop.xlane.xlu0 %503
  %v505 = vsel %vm78, %v413, 0.0
  %506 = vadd.xlane.f32.xlu0 %v505
  %v507 = vpop.xlane.xlu0 %506
  %v508 = vsel %vm78, %v414, 0.0
  %509 = vadd.xlane.f32.xlu0 %v508
  %v510 = vpop.xlane.xlu0 %509
  %v511 = vsel %vm78, %v415, 0.0
  %512 = vadd.xlane.f32.xlu0 %v511
  %v513 = vpop.xlane.xlu0 %512
  %v514 = vsel %vm78, %v416, 0.0
  %515 = vadd.xlane.f32.xlu0 %v514
  %v516 = vpop.xlane.xlu0 %515
  %v517 = vsel %vm78, %v417, 0.0
  %518 = vadd.xlane.f32.xlu0 %v517
  %v519 = vpop.xlane.xlu0 %518
  %v520 = vsel %vm78, %v418, 0.0
  %521 = vadd.xlane.f32.xlu0 %v520
  %v522 = vpop.xlane.xlu0 %521
  %v523 = vsel %vm78, %v419, 0.0
  %524 = vadd.xlane.f32.xlu0 %v523
  %v525 = vpop.xlane.xlu0 %524
  %v526 = vsel %vm78, %v420, 0.0
  %527 = vadd.xlane.f32.xlu0 %v526
  %v528 = vpop.xlane.xlu0 %527
  %v529 = vsel %vm78, %v421, 0.0
  %530 = vadd.xlane.f32.xlu0 %v529
  %v531 = vpop.xlane.xlu0 %530
  %v532 = vsel %vm78, %v422, 0.0
  %533 = vadd.xlane.f32.xlu0 %v532
  %v534 = vpop.xlane.xlu0 %533
  %v535 = vsel %vm78, %v423, 0.0
  %536 = vadd.xlane.f32.xlu0 %v535
  %v537 = vpop.xlane.xlu0 %536
  %v538 = vsel %vm78, %v424, 0.0
  %539 = vadd.xlane.f32.xlu0 %v538
  %v540 = vpop.xlane.xlu0 %539
  %v541 = vsel %vm78, %v425, 0.0
  %542 = vadd.xlane.f32.xlu0 %v541
  %v543 = vpop.xlane.xlu0 %542
  %v544 = vsel %vm78, %v426, 0.0
  %545 = vadd.xlane.f32.xlu0 %v544
  %v546 = vpop.xlane.xlu0 %545
  %v547 = vsel %vm78, %v427, 0.0
  %548 = vadd.xlane.f32.xlu0 %v547
  %v549 = vpop.xlane.xlu0 %548
  %v550 = vsel %vm78, %v428, 0.0
  %551 = vadd.xlane.f32.xlu0 %v550
  %v552 = vpop.xlane.xlu0 %551
  %v553 = vsel %vm78, %v429, 0.0
  %554 = vadd.xlane.f32.xlu0 %v553
  %v555 = vpop.xlane.xlu0 %554
  %v556 = vsel %vm78, %v430, 0.0
  %557 = vadd.xlane.f32.xlu0 %v556
  %v558 = vpop.xlane.xlu0 %557
  %v559 = vsel %vm78, %v431, 0.0
  %560 = vadd.xlane.f32.xlu0 %v559
  %v561 = vpop.xlane.xlu0 %560
  %v562 = vsel %vm78, %v432, 0.0
  %563 = vadd.xlane.f32.xlu0 %v562
  %v564 = vpop.xlane.xlu0 %563
  %v565 = vsel %vm78, %v433, 0.0
  %566 = vadd.xlane.f32.xlu0 %v565
  %v567 = vpop.xlane.xlu0 %566
  %v568 = vsel %vm78, %v434, 0.0
  %569 = vadd.xlane.f32.xlu0 %v568
  %v570 = vpop.xlane.xlu0 %569
  %v571 = vsel %vm78, %v435, 0.0
  %572 = vadd.xlane.f32.xlu0 %v571
  %v573 = vpop.xlane.xlu0 %572
  %v574 = vsel %vm78, %v436, 0.0
  %575 = vadd.xlane.f32.xlu0 %v574
  %v576 = vpop.xlane.xlu0 %575
  %v577 = vsel %vm78, %v437, 0.0
  %578 = vadd.xlane.f32.xlu0 %v577
  %v579 = vpop.xlane.xlu0 %578
  %v580 = vsel %vm78, %v438, 0.0
  %581 = vadd.xlane.f32.xlu0 %v580
  %v582 = vpop.xlane.xlu0 %581
  %v583 = vsel %vm78, %v439, 0.0
  %584 = vadd.xlane.f32.xlu0 %v583
  %v585 = vpop.xlane.xlu0 %584
  %v586 = vsel %vm78, %v440, 0.0
  %587 = vadd.xlane.f32.xlu0 %v586
  %v588 = vpop.xlane.xlu0 %587
  %v589 = vsel %vm78, %v441, 0.0
  %590 = vadd.xlane.f32.xlu0 %v589
  %v591 = vpop.xlane.xlu0 %590
  %v592 = vsel %vm78, %v442, 0.0
  %593 = vadd.xlane.f32.xlu0 %v592
  %v594 = vpop.xlane.xlu0 %593
  %v595 = vsel %vm78, %v443, 0.0
  %596 = vadd.xlane.f32.xlu0 %v595
  %v597 = vpop.xlane.xlu0 %596
  %v598 = vsel %vm78, %v444, 0.0
  %599 = vadd.xlane.f32.xlu0 %v598
  %v600 = vpop.xlane.xlu0 %599
  %v601 = vsel %vm78, %v445, 0.0
  %602 = vadd.xlane.f32.xlu0 %v601
  %v603 = vpop.xlane.xlu0 %602
  %v604 = vsel %vm78, %v446, 0.0
  %605 = vadd.xlane.f32.xlu0 %v604
  %v606 = vpop.xlane.xlu0 %605
  %v607 = vsel %vm78, %v447, 0.0
  %608 = vadd.xlane.f32.xlu0 %v607
  %v609 = vpop.xlane.xlu0 %608
  %v610 = vsel %vm78, %v448, 0.0
  %611 = vadd.xlane.f32.xlu0 %v610
  %v612 = vpop.xlane.xlu0 %611
  %v613 = vsel %vm78, %v449, 0.0
  %614 = vadd.xlane.f32.xlu0 %v613
  %v615 = vpop.xlane.xlu0 %614
  %v616 = vsel %vm78, %v450, 0.0
  %617 = vadd.xlane.f32.xlu0 %v616
  %v618 = vpop.xlane.xlu0 %617
  %v619 = vsel %vm78, %v451, 0.0
  %620 = vadd.xlane.f32.xlu0 %v619
  %v621 = vpop.xlane.xlu0 %620
  %v622 = vsel %vm78, %v452, 0.0
  %623 = vadd.xlane.f32.xlu0 %v622
  %v624 = vpop.xlane.xlu0 %623
  %v625 = vsel %vm78, %v453, 0.0
  %626 = vadd.xlane.f32.xlu0 %v625
  %v627 = vpop.xlane.xlu0 %626
  %v628 = vsel %vm78, %v454, 0.0
  %629 = vadd.xlane.f32.xlu0 %v628
  %v630 = vpop.xlane.xlu0 %629
  %v631 = vsel %vm78, %v455, 0.0
  %632 = vadd.xlane.f32.xlu0 %v631
  %v633 = vpop.xlane.xlu0 %632
  %v634 = vsel %vm78, %v456, 0.0
  %635 = vadd.xlane.f32.xlu0 %v634
  %v636 = vpop.xlane.xlu0 %635
  %v637 = vsel %vm78, %v457, 0.0
  %638 = vadd.xlane.f32.xlu0 %v637
  %v639 = vpop.xlane.xlu0 %638
  %v640 = vsel %vm78, %v458, 0.0
  %641 = vadd.xlane.f32.xlu0 %v640
  %v642 = vpop.xlane.xlu0 %641
  %v643 = vsel %vm78, %v459, 0.0
  %644 = vadd.xlane.f32.xlu0 %v643
  %v645 = vpop.xlane.xlu0 %644
  %v646 = vsel %vm78, %v460, 0.0
  %647 = vadd.xlane.f32.xlu0 %v646
  %v648 = vpop.xlane.xlu0 %647
  %v649 = vsel %vm78, %v461, 0.0
  %650 = vadd.xlane.f32.xlu0 %v649
  %v651 = vpop.xlane.xlu0 %650
  %v652 = vsel %vm78, %v462, 0.0
  %653 = vadd.xlane.f32.xlu0 %v652
  %v654 = vpop.xlane.xlu0 %653
  %v655 = vadd.f32 %v465, %v477
  %v656 = vadd.f32 %v655, %v489
  %v657 = vadd.f32 %v656, %v501
  %v658 = vadd.f32 %v657, %v513
  %v659 = vadd.f32 %v658, %v525
  %v660 = vadd.f32 %v659, %v537
  %v661 = vadd.f32 %v660, %v549
  %v662 = vadd.f32 %v661, %v561
  %v663 = vadd.f32 %v662, %v573
  %v664 = vadd.f32 %v663, %v585
  %v665 = vadd.f32 %v664, %v597
  %v666 = vadd.f32 %v665, %v609
  %v667 = vadd.f32 %v666, %v621
  %v668 = vadd.f32 %v667, %v633
  %v669 = vadd.f32 %v668, %v645
  %v670 = vadd.f32 %v468, %v480
  %v671 = vadd.f32 %v670, %v492
  %v672 = vadd.f32 %v671, %v504
  %v673 = vadd.f32 %v672, %v516
  %v674 = vadd.f32 %v673, %v528
  %v675 = vadd.f32 %v674, %v540
  %v676 = vadd.f32 %v675, %v552
  %v677 = vadd.f32 %v676, %v564
  %v678 = vadd.f32 %v677, %v576
  %v679 = vadd.f32 %v678, %v588
  %v680 = vadd.f32 %v679, %v600
  %v681 = vadd.f32 %v680, %v612
  %v682 = vadd.f32 %v681, %v624
  %v683 = vadd.f32 %v682, %v636
  %v684 = vadd.f32 %v683, %v648
  %v685 = vadd.f32 %v471, %v483
  %v686 = vadd.f32 %v685, %v495
  %v687 = vadd.f32 %v686, %v507
  %v688 = vadd.f32 %v687, %v519
  %v689 = vadd.f32 %v688, %v531
  %v690 = vadd.f32 %v689, %v543
  %v691 = vadd.f32 %v690, %v555
  %v692 = vadd.f32 %v691, %v567
  %v693 = vadd.f32 %v692, %v579
  %v694 = vadd.f32 %v693, %v591
  %v695 = vadd.f32 %v694, %v603
  %v696 = vadd.f32 %v695, %v615
  %v697 = vadd.f32 %v696, %v627
  %v698 = vadd.f32 %v697, %v639
  %v699 = vadd.f32 %v698, %v651
  %v700 = vadd.f32 %v474, %v486
  %v701 = vadd.f32 %v700, %v498
  %v702 = vadd.f32 %v701, %v510
  %v703 = vadd.f32 %v702, %v522
  %v704 = vadd.f32 %v703, %v534
  %v705 = vadd.f32 %v704, %v546
  %v706 = vadd.f32 %v705, %v558
  %v707 = vadd.f32 %v706, %v570
  %v708 = vadd.f32 %v707, %v582
  %v709 = vadd.f32 %v708, %v594
  %v710 = vadd.f32 %v709, %v606
  %v711 = vadd.f32 %v710, %v618
  %v712 = vadd.f32 %v711, %v630
  %v713 = vadd.f32 %v712, %v642
  %v714 = vadd.f32 %v713, %v654
  %v715 = vmul.f32 %v669, 0.0078125
  %v716 = vmul.f32 %v684, 0.0078125
  %v717 = vmul.f32 %v699, 0.0078125
  %v718 = vmul.f32 %v714, 0.0078125
  %v719 = vld [vmem:[%s1] sm:$0xff]
  %v720 = vld [vmem:[%s1 + $0x8] sm:$0xff]
  %v721 = vld [vmem:[%s1 + $0x10] sm:$0xff]
  %v722 = vld [vmem:[%s1 + $0x18] sm:$0xff]
  %v723 = vadd.f32 %v715, 1e-05
  %v724 = vadd.f32 %v716, 1e-05
  %v725 = vadd.f32 %v717, 1e-05
  %v726 = vadd.f32 %v718, 1e-05
  %v727 = vrsqrt.pop %v723
  %v728 = vrsqrt.pop %v724
  %v729 = vrsqrt.pop %v725
  %v730 = vrsqrt.pop %v726
  %v731 = vmul.f32 %v719, %v727
  %v732 = vmul.f32 %v720, %v728
  %v733 = vmul.f32 %v721, %v729
  %v734 = vmul.f32 %v722, %v730
  %736 = vset.pattern.permute.xlu0 0
  %737 = vperm.xlu0 %736, %v731
  %v738 = vpop.permute.xlu0 %737
  %741 = vset.pattern.permute.xlu0 0
  %742 = vperm.xlu0 %741, %v732
  %v743 = vpop.permute.xlu0 %742
  %746 = vset.pattern.permute.xlu0 0
  %747 = vperm.xlu0 %746, %v733
  %v748 = vpop.permute.xlu0 %747
  %751 = vset.pattern.permute.xlu0 0
  %752 = vperm.xlu0 %751, %v734
  %v753 = vpop.permute.xlu0 %752
  %v755 = vmul.f32 %v335, %v738
  %v756 = vmul.f32 %v336, %v743
  %v757 = vmul.f32 %v337, %v748
  %v758 = vmul.f32 %v338, %v753
  %v759 = vmul.f32 %v339, %v738
  %v760 = vmul.f32 %v340, %v743
  %v761 = vmul.f32 %v341, %v748
  %v762 = vmul.f32 %v342, %v753
  %v763 = vmul.f32 %v343, %v738
  %v764 = vmul.f32 %v344, %v743
  %v765 = vmul.f32 %v345, %v748
  %v766 = vmul.f32 %v346, %v753
  %v767 = vmul.f32 %v347, %v738
  %v768 = vmul.f32 %v348, %v743
  %v769 = vmul.f32 %v349, %v748
  %v770 = vmul.f32 %v350, %v753
  %v771 = vmul.f32 %v351, %v738
  %v772 = vmul.f32 %v352, %v743
  %v773 = vmul.f32 %v353, %v748
  %v774 = vmul.f32 %v354, %v753
  %v775 = vmul.f32 %v355, %v738
  %v776 = vmul.f32 %v356, %v743
  %v777 = vmul.f32 %v357, %v748
  %v778 = vmul.f32 %v358, %v753
  %v779 = vmul.f32 %v359, %v738
  %v780 = vmul.f32 %v360, %v743
  %v781 = vmul.f32 %v361, %v748
  %v782 = vmul.f32 %v362, %v753
  %v783 = vmul.f32 %v363, %v738
  %v784 = vmul.f32 %v364, %v743
  %v785 = vmul.f32 %v365, %v748
  %v786 = vmul.f32 %v366, %v753
  %v787 = vmul.f32 %v367, %v738
  %v788 = vmul.f32 %v368, %v743
  %v789 = vmul.f32 %v369, %v748
  %v790 = vmul.f32 %v370, %v753
  %v791 = vmul.f32 %v371, %v738
  %v792 = vmul.f32 %v372, %v743
  %v793 = vmul.f32 %v373, %v748
  %v794 = vmul.f32 %v374, %v753
  %v795 = vmul.f32 %v375, %v738
  %v796 = vmul.f32 %v376, %v743
  %v797 = vmul.f32 %v377, %v748
  %v798 = vmul.f32 %v378, %v753
  %v799 = vmul.f32 %v379, %v738
  %v800 = vmul.f32 %v380, %v743
  %v801 = vmul.f32 %v381, %v748
  %v802 = vmul.f32 %v382, %v753
  %v803 = vmul.f32 %v383, %v738
  %v804 = vmul.f32 %v384, %v743
  %v805 = vmul.f32 %v385, %v748
  %v806 = vmul.f32 %v386, %v753
  %v807 = vmul.f32 %v387, %v738
  %v808 = vmul.f32 %v388, %v743
  %v809 = vmul.f32 %v389, %v748
  %v810 = vmul.f32 %v390, %v753
  %v811 = vmul.f32 %v391, %v738
  %v812 = vmul.f32 %v392, %v743
  %v813 = vmul.f32 %v393, %v748
  %v814 = vmul.f32 %v394, %v753
  %v815 = vmul.f32 %v395, %v738
  %v816 = vmul.f32 %v396, %v743
  %v817 = vmul.f32 %v397, %v748
  %v818 = vmul.f32 %v398, %v753
  %v819 = vld [vmem:[%s2] sm:$0xff]
  %v820 = vld [vmem:[%s2 + $0x8] sm:$0xff]
  %v821 = vld [vmem:[%s2 + $0x10] sm:$0xff]
  %v822 = vld [vmem:[%s2 + $0x18] sm:$0xff]
  %824 = vset.pattern.permute.xlu0 0
  %825 = vperm.xlu0 %824, %v819
  %v826 = vpop.permute.xlu0 %825
  %829 = vset.pattern.permute.xlu0 0
  %830 = vperm.xlu0 %829, %v820
  %v831 = vpop.permute.xlu0 %830
  %834 = vset.pattern.permute.xlu0 0
  %835 = vperm.xlu0 %834, %v821
  %v836 = vpop.permute.xlu0 %835
  %839 = vset.pattern.permute.xlu0 0
  %840 = vperm.xlu0 %839, %v822
  %v841 = vpop.permute.xlu0 %840
  %v843 = vadd.f32 %v755, %v826
  %v844 = vadd.f32 %v756, %v831
  %v845 = vadd.f32 %v757, %v836
  %v846 = vadd.f32 %v758, %v841
  %v847 = vadd.f32 %v759, %v826
  %v848 = vadd.f32 %v760, %v831
  %v849 = vadd.f32 %v761, %v836
  %v850 = vadd.f32 %v762, %v841
  %v851 = vadd.f32 %v763, %v826
  %v852 = vadd.f32 %v764, %v831
  %v853 = vadd.f32 %v765, %v836
  %v854 = vadd.f32 %v766, %v841
  %v855 = vadd.f32 %v767, %v826
  %v856 = vadd.f32 %v768, %v831
  %v857 = vadd.f32 %v769, %v836
  %v858 = vadd.f32 %v770, %v841
  %v859 = vadd.f32 %v771, %v826
  %v860 = vadd.f32 %v772, %v831
  %v861 = vadd.f32 %v773, %v836
  %v862 = vadd.f32 %v774, %v841
  %v863 = vadd.f32 %v775, %v826
  %v864 = vadd.f32 %v776, %v831
  %v865 = vadd.f32 %v777, %v836
  %v866 = vadd.f32 %v778, %v841
  %v867 = vadd.f32 %v779, %v826
  %v868 = vadd.f32 %v780, %v831
  %v869 = vadd.f32 %v781, %v836
  %v870 = vadd.f32 %v782, %v841
  %v871 = vadd.f32 %v783, %v826
  %v872 = vadd.f32 %v784, %v831
  %v873 = vadd.f32 %v785, %v836
  %v874 = vadd.f32 %v786, %v841
  %v875 = vadd.f32 %v787, %v826
  %v876 = vadd.f32 %v788, %v831
  %v877 = vadd.f32 %v789, %v836
  %v878 = vadd.f32 %v790, %v841
  %v879 = vadd.f32 %v791, %v826
  %v880 = vadd.f32 %v792, %v831
  %v881 = vadd.f32 %v793, %v836
  %v882 = vadd.f32 %v794, %v841
  %v883 = vadd.f32 %v795, %v826
  %v884 = vadd.f32 %v796, %v831
  %v885 = vadd.f32 %v797, %v836
  %v886 = vadd.f32 %v798, %v841
  %v887 = vadd.f32 %v799, %v826
  %v888 = vadd.f32 %v800, %v831
  %v889 = vadd.f32 %v801, %v836
  %v890 = vadd.f32 %v802, %v841
  %v891 = vadd.f32 %v803, %v826
  %v892 = vadd.f32 %v804, %v831
  %v893 = vadd.f32 %v805, %v836
  %v894 = vadd.f32 %v806, %v841
  %v895 = vadd.f32 %v807, %v826
  %v896 = vadd.f32 %v808, %v831
  %v897 = vadd.f32 %v809, %v836
  %v898 = vadd.f32 %v810, %v841
  %v899 = vadd.f32 %v811, %v826
  %v900 = vadd.f32 %v812, %v831
  %v901 = vadd.f32 %v813, %v836
  %v902 = vadd.f32 %v814, %v841
  %v903 = vadd.f32 %v815, %v826
  %v904 = vadd.f32 %v816, %v831
  %v905 = vadd.f32 %v817, %v836
  %v906 = vadd.f32 %v818, %v841
  %907 = vst.msk [vmem:[%s3] sm:$0xff] %vm78, %v843
  %908 = vst.msk [vmem:[%s3 + $0x8] sm:$0xff] %vm78, %v844
  %909 = vst.msk [vmem:[%s3 + $0x10] sm:$0xff] %vm78, %v845
  %910 = vst.msk [vmem:[%s3 + $0x18] sm:$0xff] %vm78, %v846
  %911 = vst.msk [vmem:[%s3 + $0x20] sm:$0xff] %vm78, %v847
  %912 = vst.msk [vmem:[%s3 + $0x28] sm:$0xff] %vm78, %v848
  %913 = vst.msk [vmem:[%s3 + $0x30] sm:$0xff] %vm78, %v849
  %914 = vst.msk [vmem:[%s3 + $0x38] sm:$0xff] %vm78, %v850
  %915 = vst.msk [vmem:[%s3 + $0x40] sm:$0xff] %vm78, %v851
  %916 = vst.msk [vmem:[%s3 + $0x48] sm:$0xff] %vm78, %v852
  %917 = vst.msk [vmem:[%s3 + $0x50] sm:$0xff] %vm78, %v853
  %918 = vst.msk [vmem:[%s3 + $0x58] sm:$0xff] %vm78, %v854
  %919 = vst.msk [vmem:[%s3 + $0x60] sm:$0xff] %vm78, %v855
  %920 = vst.msk [vmem:[%s3 + $0x68] sm:$0xff] %vm78, %v856
  %921 = vst.msk [vmem:[%s3 + $0x70] sm:$0xff] %vm78, %v857
  %922 = vst.msk [vmem:[%s3 + $0x78] sm:$0xff] %vm78, %v858
  %923 = vst.msk [vmem:[%s3 + $0x80] sm:$0xff] %vm78, %v859
  %924 = vst.msk [vmem:[%s3 + $0x88] sm:$0xff] %vm78, %v860
  %925 = vst.msk [vmem:[%s3 + $0x90] sm:$0xff] %vm78, %v861
  %926 = vst.msk [vmem:[%s3 + $0x98] sm:$0xff] %vm78, %v862
  %927 = vst.msk [vmem:[%s3 + $0xa0] sm:$0xff] %vm78, %v863
  %928 = vst.msk [vmem:[%s3 + $0xa8] sm:$0xff] %vm78, %v864
  %929 = vst.msk [vmem:[%s3 + $0xb0] sm:$0xff] %vm78, %v865
  %930 = vst.msk [vmem:[%s3 + $0xb8] sm:$0xff] %vm78, %v866
  %931 = vst.msk [vmem:[%s3 + $0xc0] sm:$0xff] %vm78, %v867
  %932 = vst.msk [vmem:[%s3 + $0xc8] sm:$0xff] %vm78, %v868
  %933 = vst.msk [vmem:[%s3 + $0xd0] sm:$0xff] %vm78, %v869
  %934 = vst.msk [vmem:[%s3 + $0xd8] sm:$0xff] %vm78, %v870
  %935 = vst.msk [vmem:[%s3 + $0xe0] sm:$0xff] %vm78, %v871
  %936 = vst.msk [vmem:[%s3 + $0xe8] sm:$0xff] %vm78, %v872
  %937 = vst.msk [vmem:[%s3 + $0xf0] sm:$0xff] %vm78, %v873
  %938 = vst.msk [vmem:[%s3 + $0xf8] sm:$0xff] %vm78, %v874
  %939 = vst.msk [vmem:[%s3 + $0x100] sm:$0xff] %vm78, %v875
  %940 = vst.msk [vmem:[%s3 + $0x108] sm:$0xff] %vm78, %v876
  %941 = vst.msk [vmem:[%s3 + $0x110] sm:$0xff] %vm78, %v877
  %942 = vst.msk [vmem:[%s3 + $0x118] sm:$0xff] %vm78, %v878
  %943 = vst.msk [vmem:[%s3 + $0x120] sm:$0xff] %vm78, %v879
  %944 = vst.msk [vmem:[%s3 + $0x128] sm:$0xff] %vm78, %v880
  %945 = vst.msk [vmem:[%s3 + $0x130] sm:$0xff] %vm78, %v881
  %946 = vst.msk [vmem:[%s3 + $0x138] sm:$0xff] %vm78, %v882
  %947 = vst.msk [vmem:[%s3 + $0x140] sm:$0xff] %vm78, %v883
  %948 = vst.msk [vmem:[%s3 + $0x148] sm:$0xff] %vm78, %v884
  %949 = vst.msk [vmem:[%s3 + $0x150] sm:$0xff] %vm78, %v885
  %950 = vst.msk [vmem:[%s3 + $0x158] sm:$0xff] %vm78, %v886
  %951 = vst.msk [vmem:[%s3 + $0x160] sm:$0xff] %vm78, %v887
  %952 = vst.msk [vmem:[%s3 + $0x168] sm:$0xff] %vm78, %v888
  %953 = vst.msk [vmem:[%s3 + $0x170] sm:$0xff] %vm78, %v889
  %954 = vst.msk [vmem:[%s3 + $0x178] sm:$0xff] %vm78, %v890
  %955 = vst.msk [vmem:[%s3 + $0x180] sm:$0xff] %vm78, %v891
  %956 = vst.msk [vmem:[%s3 + $0x188] sm:$0xff] %vm78, %v892
  %957 = vst.msk [vmem:[%s3 + $0x190] sm:$0xff] %vm78, %v893
  %958 = vst.msk [vmem:[%s3 + $0x198] sm:$0xff] %vm78, %v894
  %959 = vst.msk [vmem:[%s3 + $0x1a0] sm:$0xff] %vm78, %v895
  %960 = vst.msk [vmem:[%s3 + $0x1a8] sm:$0xff] %vm78, %v896
  %961 = vst.msk [vmem:[%s3 + $0x1b0] sm:$0xff] %vm78, %v897
  %962 = vst.msk [vmem:[%s3 + $0x1b8] sm:$0xff] %vm78, %v898
  %963 = vst.msk [vmem:[%s3 + $0x1c0] sm:$0xff] %vm78, %v899
  %964 = vst.msk [vmem:[%s3 + $0x1c8] sm:$0xff] %vm78, %v900
  %965 = vst.msk [vmem:[%s3 + $0x1d0] sm:$0xff] %vm78, %v901
  %966 = vst.msk [vmem:[%s3 + $0x1d8] sm:$0xff] %vm78, %v902
  %967 = vst.msk [vmem:[%s3 + $0x1e0] sm:$0xff] %vm78, %v903
  %968 = vst.msk [vmem:[%s3 + $0x1e8] sm:$0xff] %vm78, %v904
  %969 = vst.msk [vmem:[%s3 + $0x1f0] sm:$0xff] %vm78, %v905
  %970 = vst.msk [vmem:[%s3 + $0x1f8] sm:$0xff] %vm78, %v906
  // Predicated region
  $region14: #{tpu_custom_call.1} parent=0 // pred_check
    _
  $region15: #{tpu_custom_call.1} parent=0 // pred_check_branch
    %972 = sbr.rel (0) target = $region17
  $region16: #{tpu_custom_call.1} parent=0 // pred_region
    _
  $region17: #{tpu_custom_call.1} parent=0 // pred_fallthru
    _
  // Predicated region
  $region18: #{tpu_custom_call.1} parent=0 // pred_check
    _
  $region19: #{tpu_custom_call.1} parent=0 // pred_check_branch
    %974 = sbr.rel (0) target = $region21
  $region20: #{tpu_custom_call.1} parent=0 // pred_region
    _
  $region21: #{tpu_custom_call.1} parent=0 // pred_fallthru
    _

</llo_original>
